<compile_context>
chip_gen: v6e
topology: v6e:2x2x1
jax: 0.10.0
libtpu: 0.0.40
codegen_flags: <defaults>
</compile_context>

<pallas_src>
import functools

import jax
import jax.numpy as jnp
from jax.experimental import pallas as pl
from jax.experimental.pallas import tpu as pltpu


def _round_up(x, m):
    return (x + m - 1) // m * m


# ----------------------------------------------------------------------------
# Fused kernel:
#   acc  = A @ B                      (conv branch, MXU, bf16 -> f32 acc)
#   pool = max over the 4 im2col taps (i,j) in {1,2}x{1,2}   (2x2 maxpool branch)
#   acc += pool @ SEL                 (places pool into cols [Cconv, Cconv+Cin))
#   o    = relu(acc * scale + shift)  (folded BatchNorm + conv bias + ReLU)
# ----------------------------------------------------------------------------
def _dsblock_kernel(a_ref, b_ref, sel_ref, s_ref, t_ref, o_ref, *, cin):
    acc = jnp.dot(a_ref[...], b_ref[...], preferred_element_type=jnp.float32)
    # 2x2 / stride-2 maxpool recomputed from the im2col columns (taps 4, 5, 7, 8).
    pool = jnp.maximum(
        jnp.maximum(a_ref[:, 4 * cin:5 * cin], a_ref[:, 5 * cin:6 * cin]),
        jnp.maximum(a_ref[:, 7 * cin:8 * cin], a_ref[:, 8 * cin:9 * cin]),
    )
    # Selector matmul parks pooled channels in output columns [Cconv, Cconv+Cin);
    # B's pool columns are zero, so the add realises the channel concat.
    acc = acc + jnp.dot(pool, sel_ref[...], preferred_element_type=jnp.float32)
    y = acc * s_ref[...] + t_ref[...]
    o_ref[...] = jnp.maximum(y, 0.0).astype(o_ref.dtype)


# ----------------------------------------------------------------------------
# DownsamplerBlock forward (NCHW, even H and W)
# ----------------------------------------------------------------------------
@jax.jit
def downsampler_block(x, w, b, gamma, beta, mean, var, eps=1e-3):
    N, Cin, H, W = x.shape
    assert H % 2 == 0 and W % 2 == 0, "even spatial dims required (as in the module)"
    Cconv = w.shape[0]                 # = noutput - ninput
    Cout = Cconv + Cin                 # = noutput
    Ho, Wo = H // 2, W // 2
    M = N * Ho * Wo
    K = 9 * Cin

    # ---- im2col for the 3x3 / stride-2 / pad-1 conv (bf16 from the start) ---
    xp = jnp.pad(x.astype(jnp.bfloat16), ((0, 0), (0, 0), (1, 1), (1, 1)))
    cols = [xp[:, :, i:i + 2 * Ho - 1:2, j:j + 2 * Wo - 1:2]      # (N, Cin, Ho, Wo)
            for i in range(3) for j in range(3)]
    A = jnp.stack(cols, axis=1)                                   # (N, 9, Cin, Ho, Wo)
    A = A.transpose(0, 3, 4, 1, 2).reshape(M, K)                  # rows = (n, ho, wo)
    B = w.transpose(2, 3, 1, 0).reshape(K, Cconv)                 # row = (3i+j)*Cin + c

    # ---- fold BatchNorm (running stats) + conv bias into scale / shift ------
    inv = gamma / jnp.sqrt(var + eps)                             # (Cout,)
    shift = beta - mean * inv
    shift = shift.at[:Cconv].add(b * inv[:Cconv])                 # conv bias folded in

    # ---- TPU-friendly shapes -------------------------------------------------
    Np = _round_up(Cout, 128)          # lane-dense output, keep at 128 (don't widen)

    # M tiling: ~1024-row tiles, keep the grid even (>1) for v7x dual-TC balance.
    grid_m = max(1, -(-M // 1024))
    if grid_m > 1 and grid_m % 2:
        grid_m += 1
    TM = _round_up(-(-M // grid_m), 16)
    Mp = TM * grid_m

    A_p = jnp.pad(A, ((0, Mp - M), (0, 0)))                       # NO K padding in HBM
    B_p = jnp.pad(B.astype(jnp.bfloat16), ((0, 0), (0, Np - Cconv)))
    sel = jnp.pad(jnp.eye(Cin, dtype=jnp.bfloat16),
                  ((0, 0), (Cconv, Np - Cout)))                   # (Cin, Np) 0/1 selector
    s_p = jnp.pad(inv, (0, Np - Cout), constant_values=1.0).reshape(1, Np)
    t_p = jnp.pad(shift, (0, Np - Cout)).reshape(1, Np)

    out = pl.pallas_call(
        functools.partial(_dsblock_kernel, cin=Cin),
        out_shape=jax.ShapeDtypeStruct((Mp, Np), jnp.float32),
        grid_spec=pltpu.PrefetchScalarGridSpec(
            num_scalar_prefetch=0,
            grid=(grid_m,),
            in_specs=[
                pl.BlockSpec((TM, K), lambda i: (i, 0)),    # A tile (contiguous slab)
                pl.BlockSpec((K, Np), lambda i: (0, 0)),    # conv weights, resident
                pl.BlockSpec((Cin, Np), lambda i: (0, 0)),  # pool selector, resident
                pl.BlockSpec((1, Np), lambda i: (0, 0)),    # scale
                pl.BlockSpec((1, Np), lambda i: (0, 0)),    # shift
            ],
            out_specs=pl.BlockSpec((TM, Np), lambda i: (i, 0)),
        ),
        compiler_params=pltpu.CompilerParams(
            dimension_semantics=("parallel",),
        ),
    )(A_p, B_p, sel, s_p, t_p)

    out = out[:M, :Cout].reshape(N, Ho, Wo, Cout).transpose(0, 3, 1, 2)
    return out


# ----------------------------------------------------------------------------
# Pure-JAX reference (eval-mode PyTorch semantics) for a correctness check
# ----------------------------------------------------------------------------
def _reference(x, w, b, gamma, beta, mean, var, eps=1e-3):
    conv = jax.lax.conv_general_dilated(
        x, w, window_strides=(2, 2), padding=((1, 1), (1, 1)),
        dimension_numbers=('NCHW', 'OIHW', 'NCHW'))
    conv = conv + b[None, :, None, None]
    N, C, H, W = x.shape
    pool = x.reshape(N, C, H // 2, 2, W // 2, 2).max(axis=(3, 5))
    y = jnp.concatenate([conv, pool], axis=1)
    inv = gamma / jnp.sqrt(var + eps)
    y = y * inv[None, :, None, None] + (beta - mean * inv)[None, :, None, None]
    return jnp.maximum(y, 0.0)


if __name__ == "__main__":
    key = jax.random.PRNGKey(0)
    k_x, k_w, k_b, k_g, k_be, k_m, k_v = jax.random.split(key, 7)

    N, ninput, noutput, H, W = 2, 4, 16, 16, 16
    Cconv = noutput - ninput
    fan_in = ninput * 9

    x = jax.random.normal(k_x, (N, ninput, H, W), jnp.float32)
    w = jax.random.normal(k_w, (Cconv, ninput, 3, 3), jnp.float32) * (2.0 / fan_in) ** 0.5
    b = 0.01 * jax.random.normal(k_b, (Cconv,), jnp.float32)
    gamma = 1.0 + 0.1 * jax.random.normal(k_g, (noutput,), jnp.float32)
    beta = 0.1 * jax.random.normal(k_be, (noutput,), jnp.float32)
    mean = 0.1 * jax.random.normal(k_m, (noutput,), jnp.float32)
    var = 1.0 + 0.1 * jax.random.uniform(k_v, (noutput,), jnp.float32)

    out = downsampler_block(x, w, b, gamma, beta, mean, var)
    out = jax.block_until_ready(out)

    assert out.shape == (N, noutput, H // 2, W // 2)
    assert bool(jnp.all(jnp.isfinite(out)))

    ref = _reference(x, w, b, gamma, beta, mean, var)
    max_err = float(jnp.max(jnp.abs(out - ref)))
    scale = float(jnp.max(jnp.abs(ref))) + 1e-6
    # bf16 matmul / pool inputs with f32 accumulation -> loose tolerance
    assert max_err <= 5e-2 * scale + 1e-3, f"max_err={max_err}, scale={scale}"

    print("KERNEL_OK")
</pallas_src>

<mosaic_0001>
module attributes {stable_mosaic.version = 11 : i64} {
  func.func @_dsblock_kernel(%arg0: i32, %arg1: memref<128x36xbf16, #tpu.memory_space<vmem>>, %arg2: memref<36x128xbf16, #tpu.memory_space<vmem>>, %arg3: memref<4x128xbf16, #tpu.memory_space<vmem>>, %arg4: memref<1x128xf32, #tpu.memory_space<vmem>>, %arg5: memref<1x128xf32, #tpu.memory_space<vmem>>, %arg6: memref<128x128xf32, #tpu.memory_space<vmem>>) attributes {dimension_semantics = [#tpu.dimension_semantics<parallel>], iteration_bounds = array<i64: 1>, scalar_prefetch = 0 : i64, scratch_operands = 0 : i64, tpu.core_type = #tpu.core_type<tc>, window_params = [{transform_indices = @transform_0, window_bounds = array<i64: 128, 36>}, {pipeline_mode = #tpu.pipeline_mode<synchronous>, transform_indices = @transform_1, window_bounds = array<i64: 36, 128>}, {pipeline_mode = #tpu.pipeline_mode<synchronous>, transform_indices = @transform_2, window_bounds = array<i64: 4, 128>}, {pipeline_mode = #tpu.pipeline_mode<synchronous>, transform_indices = @transform_3, window_bounds = array<i64: 1, 128>}, {pipeline_mode = #tpu.pipeline_mode<synchronous>, transform_indices = @transform_4, window_bounds = array<i64: 1, 128>}, {transform_indices = @transform_5, window_bounds = array<i64: 128, 128>}]} {
    %c0 = arith.constant 0 : index
    %c0_0 = arith.constant 0 : index
    %0 = vector.load %arg1[%c0, %c0_0] : memref<128x36xbf16, #tpu.memory_space<vmem>>, vector<128x36xbf16>
    %c0_1 = arith.constant 0 : index
    %c0_2 = arith.constant 0 : index
    %1 = vector.load %arg2[%c0_1, %c0_2] : memref<36x128xbf16, #tpu.memory_space<vmem>>, vector<36x128xbf16>
    %cst = arith.constant dense<0.000000e+00> : vector<128x128xf32>
    %2 = tpu.matmul %0, %1, %cst {dimension_numbers = #tpu.dot_dimension_numbers<[1], [0], [0], [1], [0, 0, 1, 1], [], []>} : vector<128x36xbf16>, vector<36x128xbf16>, vector<128x128xf32> -> vector<128x128xf32>
    %c0_3 = arith.constant 0 : index
    %c16 = arith.constant 16 : index
    %3 = vector.load %arg1[%c0_3, %c16] : memref<128x36xbf16, #tpu.memory_space<vmem>>, vector<128x4xbf16>
    %c0_4 = arith.constant 0 : index
    %c20 = arith.constant 20 : index
    %4 = vector.load %arg1[%c0_4, %c20] : memref<128x36xbf16, #tpu.memory_space<vmem>>, vector<128x4xbf16>
    %5 = arith.maximumf %3, %4 : vector<128x4xbf16>
    %c0_5 = arith.constant 0 : index
    %c28 = arith.constant 28 : index
    %6 = vector.load %arg1[%c0_5, %c28] : memref<128x36xbf16, #tpu.memory_space<vmem>>, vector<128x4xbf16>
    %c0_6 = arith.constant 0 : index
    %c32 = arith.constant 32 : index
    %7 = vector.load %arg1[%c0_6, %c32] : memref<128x36xbf16, #tpu.memory_space<vmem>>, vector<128x4xbf16>
    %8 = arith.maximumf %6, %7 : vector<128x4xbf16>
    %9 = arith.maximumf %5, %8 : vector<128x4xbf16>
    %c0_7 = arith.constant 0 : index
    %c0_8 = arith.constant 0 : index
    %10 = vector.load %arg3[%c0_7, %c0_8] : memref<4x128xbf16, #tpu.memory_space<vmem>>, vector<4x128xbf16>
    %cst_9 = arith.constant dense<0.000000e+00> : vector<128x128xf32>
    %11 = tpu.matmul %9, %10, %cst_9 {dimension_numbers = #tpu.dot_dimension_numbers<[1], [0], [0], [1], [0, 0, 1, 1], [], []>} : vector<128x4xbf16>, vector<4x128xbf16>, vector<128x128xf32> -> vector<128x128xf32>
    %12 = arith.addf %2, %11 : vector<128x128xf32>
    %c0_10 = arith.constant 0 : index
    %c0_11 = arith.constant 0 : index
    %13 = vector.load %arg4[%c0_10, %c0_11] : memref<1x128xf32, #tpu.memory_space<vmem>>, vector<1x128xf32>
    %14 = vector.broadcast %13 : vector<1x128xf32> to vector<128x128xf32>
    %15 = arith.mulf %12, %14 : vector<128x128xf32>
    %c0_12 = arith.constant 0 : index
    %c0_13 = arith.constant 0 : index
    %16 = vector.load %arg5[%c0_12, %c0_13] : memref<1x128xf32, #tpu.memory_space<vmem>>, vector<1x128xf32>
    %17 = vector.broadcast %16 : vector<1x128xf32> to vector<128x128xf32>
    %18 = arith.addf %15, %17 : vector<128x128xf32>
    %cst_14 = arith.constant 0.000000e+00 : f32
    %19 = vector.broadcast %cst_14 : f32 to vector<128x128xf32>
    %20 = arith.maximumf %18, %19 : vector<128x128xf32>
    %c0_15 = arith.constant 0 : index
    %c0_16 = arith.constant 0 : index
    %21 = vector.load %arg6[%c0_15, %c0_16] : memref<128x128xf32, #tpu.memory_space<vmem>>, vector<128x128xf32>
    tpu.vector_store %arg6[%c0_15, %c0_16], %20 {strides = array<i32>} : memref<128x128xf32, #tpu.memory_space<vmem>>, vector<128x128xf32>,
    return
  }
  func.func @transform_0(%arg0: i32) -> (i32, i32) {
    %c0_i32 = arith.constant 0 : i32
    %c0_i32_0 = arith.constant 0 : i32
    return %arg0, %c0_i32 : i32, i32
  }
  func.func @transform_1(%arg0: i32) -> (i32, i32) {
    %c0_i32 = arith.constant 0 : i32
    %c0_i32_0 = arith.constant 0 : i32
    %c0_i32_1 = arith.constant 0 : i32
    return %c0_i32, %c0_i32_0 : i32, i32
  }
  func.func @transform_2(%arg0: i32) -> (i32, i32) {
    %c0_i32 = arith.constant 0 : i32
    %c0_i32_0 = arith.constant 0 : i32
    %c0_i32_1 = arith.constant 0 : i32
    return %c0_i32, %c0_i32_0 : i32, i32
  }
  func.func @transform_3(%arg0: i32) -> (i32, i32) {
    %c0_i32 = arith.constant 0 : i32
    %c0_i32_0 = arith.constant 0 : i32
    %c0_i32_1 = arith.constant 0 : i32
    return %c0_i32, %c0_i32_0 : i32, i32
  }
  func.func @transform_4(%arg0: i32) -> (i32, i32) {
    %c0_i32 = arith.constant 0 : i32
    %c0_i32_0 = arith.constant 0 : i32
    %c0_i32_1 = arith.constant 0 : i32
    return %c0_i32, %c0_i32_0 : i32, i32
  }
  func.func @transform_5(%arg0: i32) -> (i32, i32) {
    %c0_i32 = arith.constant 0 : i32
    %c0_i32_0 = arith.constant 0 : i32
    return %arg0, %c0_i32 : i32, i32
  }
}

</mosaic_0001>

<llo_original>
// kernel: downsampler_block.1
$region0: #{downsampler_block.1}
  #allocation0 [shape = 'u32[]', space=smem, size = 0x4, offset = 0x4, fixed_abs, tag = 'smem constant byte address 0x4 - core index']
  #allocation1 [shape = 'u32[144,128]{1,0:T(1,128)}', space=vmem, size = 0x12000, scoped, tag = 'internal scratch']
  %s0 = inlined_call_operand.vmem [shape: bf16[128,36], index: 0, kind: input, shape index: {}]
  %s1 = inlined_call_operand.vmem [shape: bf16[36,128], index: 1, kind: input, shape index: {}]
  %s2 = inlined_call_operand.vmem [shape: bf16[4,128], index: 2, kind: input, shape index: {}]
  %s3 = inlined_call_operand.vmem [shape: f32[1,128], index: 3, kind: input, shape index: {}]
  %s4 = inlined_call_operand.vmem [shape: f32[1,128], index: 4, kind: input, shape index: {}]
  %s5 = inlined_call_operand.hbm [shape: f32[128,128], index: 5, kind: output, shape index: {}]
  %s6 = sld [smem:[#allocation0]]
  $region30: #{downsampler_block.1} parent=0
    _
  %s8 = ssub.s32 1, %s6
  %s9 = scalar_select 0, %s8, %s6
  $region1: #{downsampler_block.1} parent=0
    #allocation2 [shape = 'u8[65536]{0}', space=vmem, size = 0x10000, scoped, tag = 'output window, operand 0, single buffered']
    #allocation3 [shape = 's32[1]{0}', space=sflag, size = 0x4, scoped, tag = 'scoped memory for downsampler_block.1']
    %10 = vsyncpa [#allocation3], 0
    // Predicated region
    $region2: #{downsampler_block.1} parent=1 // pred_check
      _
    $region3: #{downsampler_block.1} parent=1 // pred_check_branch
      %12 = sbr.rel (0) target = $region5
    $region4: #{downsampler_block.1} parent=1 // pred_region
      _
    $region5: #{downsampler_block.1} parent=1 // pred_fallthru
      _
    // Predicated region
    $region6: #{downsampler_block.1} parent=1 // pred_check
      _
    $region7: #{downsampler_block.1} parent=1 // pred_check_branch
      %14 = sbr.rel (0) target = $region9
    $region8: #{downsampler_block.1} parent=1 // pred_region
      _
    $region9: #{downsampler_block.1} parent=1 // pred_fallthru
      _
    // Predicated region
    $region10: #{downsampler_block.1} parent=1 // pred_check
      _
    $region11: #{downsampler_block.1} parent=1 // pred_check_branch
      %16 = sbr.rel (0) target = $region13
    $region12: #{downsampler_block.1} parent=1 // pred_region
      _
    $region13: #{downsampler_block.1} parent=1 // pred_fallthru
      _
    // Predicated region
    $region14: #{downsampler_block.1} parent=1 // pred_check
      _
    $region15: #{downsampler_block.1} parent=1 // pred_check_branch
      %18 = sbr.rel (0) target = $region17
    $region16: #{downsampler_block.1} parent=1 // pred_region
      _
    $region17: #{downsampler_block.1} parent=1 // pred_fallthru
      _
    // Predicated region
    $region18: #{downsampler_block.1} parent=1 // pred_check
      _
    $region19: #{downsampler_block.1} parent=1 // pred_check_branch
      %20 = sbr.rel (0) target = $region21
    $region20: #{downsampler_block.1} parent=1 // pred_region
      _
    $region21: #{downsampler_block.1} parent=1 // pred_fallthru
      _
    %v22 = vld [vmem:[%s0] sm:$0xf]
    %v23 = vld [vmem:[%s0 + $0x4] sm:$0xf]
    %v24 = vld [vmem:[%s0 + $0x8] sm:$0xf]
    %v25 = vld [vmem:[%s0 + $0xc] sm:$0xf]
    %v26 = vld [vmem:[%s0 + $0x10] sm:$0xf]
    %v27 = vld [vmem:[%s0 + $0x14] sm:$0xf]
    %v28 = vld [vmem:[%s0 + $0x18] sm:$0xf]
    %v29 = vld [vmem:[%s0 + $0x1c] sm:$0xf]
    %v30 = vld [vmem:[%s0 + $0x20] sm:$0xf]
    %v31 = vld [vmem:[%s0 + $0x24] sm:$0xf]
    %v32 = vld [vmem:[%s0 + $0x28] sm:$0xf]
    %v33 = vld [vmem:[%s0 + $0x2c] sm:$0xf]
    %v34 = vld [vmem:[%s0 + $0x30] sm:$0xf]
    %v35 = vld [vmem:[%s0 + $0x34] sm:$0xf]
    %v36 = vld [vmem:[%s0 + $0x38] sm:$0xf]
    %v37 = vld [vmem:[%s0 + $0x3c] sm:$0xf]
    %v38 = vld [vmem:[%s1] sm:$0xf]
    %v39 = vld [vmem:[%s1 + $0x4] sm:$0xf]
    %v40 = vld [vmem:[%s1 + $0x8] sm:$0xf]
    %v41 = vld [vmem:[%s1 + $0xc] sm:$0xf]
    %v42 = vld [vmem:[%s1 + $0x10] sm:$0x3]
    %59 = vrot.lane.b32.xlu0 %v22, 124
    %v60 = vpop.permute.xlu0 %59
    %61 = vrot.lane.b32.xlu0 %v23, 124
    %v62 = vpop.permute.xlu0 %61
    %63 = vrot.lane.b32.xlu0 %v24, 124
    %v64 = vpop.permute.xlu0 %63
    %65 = vrot.lane.b32.xlu0 %v25, 124
    %v66 = vpop.permute.xlu0 %65
    %67 = vrot.lane.b32.xlu0 %v26, 124
    %v68 = vpop.permute.xlu0 %67
    %69 = vrot.lane.b32.xlu0 %v27, 124
    %v70 = vpop.permute.xlu0 %69
    %71 = vrot.lane.b32.xlu0 %v28, 124
    %v72 = vpop.permute.xlu0 %71
    %73 = vrot.lane.b32.xlu0 %v29, 124
    %v74 = vpop.permute.xlu0 %73
    %75 = vrot.lane.b32.xlu0 %v30, 124
    %v76 = vpop.permute.xlu0 %75
    %77 = vrot.lane.b32.xlu0 %v31, 124
    %v78 = vpop.permute.xlu0 %77
    %79 = vrot.lane.b32.xlu0 %v32, 124
    %v80 = vpop.permute.xlu0 %79
    %81 = vrot.lane.b32.xlu0 %v33, 124
    %v82 = vpop.permute.xlu0 %81
    %83 = vrot.lane.b32.xlu0 %v34, 124
    %v84 = vpop.permute.xlu0 %83
    %85 = vrot.lane.b32.xlu0 %v35, 124
    %v86 = vpop.permute.xlu0 %85
    %87 = vrot.lane.b32.xlu0 %v36, 124
    %v88 = vpop.permute.xlu0 %87
    %89 = vrot.lane.b32.xlu0 %v37, 124
    %v90 = vpop.permute.xlu0 %89
    %v107 = vmax.bf16 %v22, %v60
    %v108 = vmax.bf16 %v23, %v62
    %v109 = vmax.bf16 %v24, %v64
    %v110 = vmax.bf16 %v25, %v66
    %v111 = vmax.bf16 %v26, %v68
    %v112 = vmax.bf16 %v27, %v70
    %v113 = vmax.bf16 %v28, %v72
    %v114 = vmax.bf16 %v29, %v74
    %v115 = vmax.bf16 %v30, %v76
    %v116 = vmax.bf16 %v31, %v78
    %v117 = vmax.bf16 %v32, %v80
    %v118 = vmax.bf16 %v33, %v82
    %v119 = vmax.bf16 %v34, %v84
    %v120 = vmax.bf16 %v35, %v86
    %v121 = vmax.bf16 %v36, %v88
    %v122 = vmax.bf16 %v37, %v90
    %139 = vrot.lane.b32.xlu0 %v107, 116
    %v140 = vpop.permute.xlu0 %139
    %141 = vrot.lane.b32.xlu0 %v108, 116
    %v142 = vpop.permute.xlu0 %141
    %143 = vrot.lane.b32.xlu0 %v109, 116
    %v144 = vpop.permute.xlu0 %143
    %145 = vrot.lane.b32.xlu0 %v110, 116
    %v146 = vpop.permute.xlu0 %145
    %147 = vrot.lane.b32.xlu0 %v111, 116
    %v148 = vpop.permute.xlu0 %147
    %149 = vrot.lane.b32.xlu0 %v112, 116
    %v150 = vpop.permute.xlu0 %149
    %151 = vrot.lane.b32.xlu0 %v113, 116
    %v152 = vpop.permute.xlu0 %151
    %153 = vrot.lane.b32.xlu0 %v114, 116
    %v154 = vpop.permute.xlu0 %153
    %155 = vrot.lane.b32.xlu0 %v115, 116
    %v156 = vpop.permute.xlu0 %155
    %157 = vrot.lane.b32.xlu0 %v116, 116
    %v158 = vpop.permute.xlu0 %157
    %159 = vrot.lane.b32.xlu0 %v117, 116
    %v160 = vpop.permute.xlu0 %159
    %161 = vrot.lane.b32.xlu0 %v118, 116
    %v162 = vpop.permute.xlu0 %161
    %163 = vrot.lane.b32.xlu0 %v119, 116
    %v164 = vpop.permute.xlu0 %163
    %165 = vrot.lane.b32.xlu0 %v120, 116
    %v166 = vpop.permute.xlu0 %165
    %167 = vrot.lane.b32.xlu0 %v121, 116
    %v168 = vpop.permute.xlu0 %167
    %169 = vrot.lane.b32.xlu0 %v122, 116
    %v170 = vpop.permute.xlu0 %169
    %v187 = vmax.bf16 %v107, %v140
    %v188 = vmax.bf16 %v108, %v142
    %v189 = vmax.bf16 %v109, %v144
    %v190 = vmax.bf16 %v110, %v146
    %v191 = vmax.bf16 %v111, %v148
    %v192 = vmax.bf16 %v112, %v150
    %v193 = vmax.bf16 %v113, %v152
    %v194 = vmax.bf16 %v114, %v154
    %v195 = vmax.bf16 %v115, %v156
    %v196 = vmax.bf16 %v116, %v158
    %v197 = vmax.bf16 %v117, %v160
    %v198 = vmax.bf16 %v118, %v162
    %v199 = vmax.bf16 %v119, %v164
    %v200 = vmax.bf16 %v120, %v166
    %v201 = vmax.bf16 %v121, %v168
    %v202 = vmax.bf16 %v122, %v170
    %v203 = vld [vmem:[%s2] sm:$0x3]
    %v220 = vunpack.c.l.b16 %v187
    %v221 = vunpack.c.l.b16 %v188
    %v222 = vunpack.c.l.b16 %v189
    %v223 = vunpack.c.l.b16 %v190
    %v224 = vunpack.c.l.b16 %v191
    %v225 = vunpack.c.l.b16 %v192
    %v226 = vunpack.c.l.b16 %v193
    %v227 = vunpack.c.l.b16 %v194
    %v228 = vunpack.c.l.b16 %v195
    %v229 = vunpack.c.l.b16 %v196
    %v230 = vunpack.c.l.b16 %v197
    %v231 = vunpack.c.l.b16 %v198
    %v232 = vunpack.c.l.b16 %v199
    %v233 = vunpack.c.l.b16 %v200
    %v234 = vunpack.c.l.b16 %v201
    %v235 = vunpack.c.l.b16 %v202
    %v236 = vpack.c.b16 %v221, %v220
    %v237 = vpack.c.b16 %v223, %v222
    %v238 = vpack.c.b16 %v225, %v224
    %v239 = vpack.c.b16 %v227, %v226
    %v240 = vpack.c.b16 %v229, %v228
    %v241 = vpack.c.b16 %v231, %v230
    %v242 = vpack.c.b16 %v233, %v232
    %v243 = vpack.c.b16 %v235, %v234
    %244 = vrot.lane.b32.xlu0 %v236, 112
    %v245 = vpop.permute.xlu0 %244
    %246 = vrot.lane.b32.xlu0 %v237, 112
    %v247 = vpop.permute.xlu0 %246
    %248 = vrot.lane.b32.xlu0 %v238, 112
    %v249 = vpop.permute.xlu0 %248
    %250 = vrot.lane.b32.xlu0 %v239, 112
    %v251 = vpop.permute.xlu0 %250
    %252 = vrot.lane.b32.xlu0 %v240, 112
    %v253 = vpop.permute.xlu0 %252
    %254 = vrot.lane.b32.xlu0 %v241, 112
    %v255 = vpop.permute.xlu0 %254
    %256 = vrot.lane.b32.xlu0 %v242, 112
    %v257 = vpop.permute.xlu0 %256
    %258 = vrot.lane.b32.xlu0 %v243, 112
    %v259 = vpop.permute.xlu0 %258
    %vm260 = vcmask 31744
    %v262 = vsel %vm260, %v245, 0
    %v265 = vsel %vm260, %v247, 0
    %v268 = vsel %vm260, %v249, 0
    %v271 = vsel %vm260, %v251, 0
    %v274 = vsel %vm260, %v253, 0
    %v277 = vsel %vm260, %v255, 0
    %v280 = vsel %vm260, %v257, 0
    %v283 = vsel %vm260, %v259, 0
    %vm285 = vcmask 1041408
    %v287 = vsel %vm285, %v203, 0
    %289 = vmatprep.subr.bf16.mxu0 0
    %290 = vmatpush1.bf16.msra.mxu0 0
    %291 = vmatprep.subr.bf16.mxu0 0
    %292 = vmatpush1.bf16.msra.mxu0 0
    %293 = vmatprep.subr.bf16.mxu0 0
    %294 = vmatpush1.bf16.msra.mxu0 0
    %295 = vmatprep.subr.bf16.mxu0 0
    %296 = vmatpush1.bf16.msra.mxu0 0
    %297 = vmatprep.subr.bf16.mxu0 0
    %298 = vmatpush1.bf16.msra.mxu0 0
    %299 = vmatprep.subr.bf16.mxu0 0
    %300 = vmatpush1.bf16.msra.mxu0 0
    %301 = vmatprep.subr.bf16.mxu0 0
    %302 = vmatpush1.bf16.msra.mxu0 0
    %303 = vmatprep.subr.bf16.mxu0 0
    %304 = vmatpush1.bf16.msra.mxu0 %v287
    %305 = vmatprep.subr.bf16.mxu0 0
    %306 = vmatpush2.bf16.msra.mxu0 0
    %307 = vmatprep.subr.bf16.mxu0 0
    %308 = vmatpush2.bf16.msra.mxu0 0
    %309 = vmatprep.subr.bf16.mxu0 0
    %310 = vmatpush2.bf16.msra.mxu0 0
    %311 = vmatprep.subr.bf16.mxu0 0
    %312 = vmatpush2.bf16.msra.mxu0 0
    %313 = vmatprep.subr.bf16.mxu0 0
    %314 = vmatpush2.bf16.msra.mxu0 0
    %315 = vmatprep.subr.bf16.mxu0 0
    %316 = vmatpush2.bf16.msra.mxu0 0
    %317 = vmatprep.subr.bf16.mxu0 0
    %318 = vmatpush2.bf16.msra.mxu0 0
    %319 = vmatprep.subr.bf16.mxu0 0
    %320 = vmatpush2.bf16.msra.mxu0 0
    %321 = vmatprep.mubr.bf16.mxu0 0
    %322 = vmatmul.mubr.bf16.gmra.mxu0 %v262
    %v323 = vpop.f32.mrf.mxu0
    %v324 = vadd.f32 0.0, %v323
    %v325 = vpop.f32.mrf.mxu0
    %v326 = vpop.f32.mrf.mxu0
    %v327 = vadd.f32 0.0, %v326
    %v328 = vpop.f32.mrf.mxu0
    %329 = vmatprep.mubr.bf16.mxu0 0
    %330 = vmatmul.mubr.bf16.gmra.mxu0 %v265
    %v331 = vpop.f32.mrf.mxu0
    %v332 = vadd.f32 0.0, %v331
    %v333 = vpop.f32.mrf.mxu0
    %v334 = vpop.f32.mrf.mxu0
    %v335 = vadd.f32 0.0, %v334
    %v336 = vpop.f32.mrf.mxu0
    %337 = vmatprep.mubr.bf16.mxu0 0
    %338 = vmatmul.mubr.bf16.gmra.mxu0 %v268
    %v339 = vpop.f32.mrf.mxu0
    %v340 = vadd.f32 0.0, %v339
    %v341 = vpop.f32.mrf.mxu0
    %v342 = vpop.f32.mrf.mxu0
    %v343 = vadd.f32 0.0, %v342
    %v344 = vpop.f32.mrf.mxu0
    %345 = vmatprep.mubr.bf16.mxu0 0
    %346 = vmatmul.mubr.bf16.gmra.mxu0 %v271
    %v347 = vpop.f32.mrf.mxu0
    %v348 = vadd.f32 0.0, %v347
    %v349 = vpop.f32.mrf.mxu0
    %v350 = vpop.f32.mrf.mxu0
    %v351 = vadd.f32 0.0, %v350
    %v352 = vpop.f32.mrf.mxu0
    %353 = vmatprep.mubr.bf16.mxu0 0
    %354 = vmatmul.mubr.bf16.gmra.mxu0 %v274
    %v355 = vpop.f32.mrf.mxu0
    %v356 = vadd.f32 0.0, %v355
    %v357 = vpop.f32.mrf.mxu0
    %v358 = vpop.f32.mrf.mxu0
    %v359 = vadd.f32 0.0, %v358
    %v360 = vpop.f32.mrf.mxu0
    %361 = vmatprep.mubr.bf16.mxu0 0
    %362 = vmatmul.mubr.bf16.gmra.mxu0 %v277
    %v363 = vpop.f32.mrf.mxu0
    %v364 = vadd.f32 0.0, %v363
    %v365 = vpop.f32.mrf.mxu0
    %v366 = vpop.f32.mrf.mxu0
    %v367 = vadd.f32 0.0, %v366
    %v368 = vpop.f32.mrf.mxu0
    %369 = vmatprep.mubr.bf16.mxu0 0
    %370 = vmatmul.mubr.bf16.gmra.mxu0 %v280
    %v371 = vpop.f32.mrf.mxu0
    %v372 = vadd.f32 0.0, %v371
    %v373 = vpop.f32.mrf.mxu0
    %v374 = vpop.f32.mrf.mxu0
    %v375 = vadd.f32 0.0, %v374
    %v376 = vpop.f32.mrf.mxu0
    %377 = vmatprep.mubr.bf16.mxu0 0
    %378 = vmatmul.mubr.bf16.gmra.mxu0 %v283
    %v379 = vpop.f32.mrf.mxu0
    %v380 = vadd.f32 0.0, %v379
    %v381 = vpop.f32.mrf.mxu0
    %v382 = vpop.f32.mrf.mxu0
    %v383 = vadd.f32 0.0, %v382
    %v384 = vpop.f32.mrf.mxu0
    %385 = vdwg.mxu0
    %v386 = vunpack.c.l.b16 %v22
    %v387 = vunpack.c.l.b16 %v23
    %v388 = vunpack.c.l.b16 %v24
    %v389 = vunpack.c.l.b16 %v25
    %v390 = vunpack.c.l.b16 %v26
    %v391 = vunpack.c.l.b16 %v27
    %v392 = vunpack.c.l.b16 %v28
    %v393 = vunpack.c.l.b16 %v29
    %v394 = vunpack.c.l.b16 %v30
    %v395 = vunpack.c.l.b16 %v31
    %v396 = vunpack.c.l.b16 %v32
    %v397 = vunpack.c.l.b16 %v33
    %v398 = vunpack.c.l.b16 %v34
    %v399 = vunpack.c.l.b16 %v35
    %v400 = vunpack.c.l.b16 %v36
    %v401 = vunpack.c.l.b16 %v37
    %v402 = vpack.c.b16 %v387, %v386
    %v403 = vpack.c.b16 %v389, %v388
    %v404 = vpack.c.b16 %v391, %v390
    %v405 = vpack.c.b16 %v393, %v392
    %v406 = vpack.c.b16 %v395, %v394
    %v407 = vpack.c.b16 %v397, %v396
    %v408 = vpack.c.b16 %v399, %v398
    %v409 = vpack.c.b16 %v401, %v400
    %v415 = vunpack.c.l.b16 %v38
    %v416 = vunpack.c.l.b16 %v39
    %v417 = vunpack.c.l.b16 %v40
    %v418 = vunpack.c.l.b16 %v41
    %v419 = vunpack.c.l.b16 %v42
    %v420 = vpack.c.b16 %v416, %v415
    %v421 = vpack.c.b16 %v418, %v417
    %v422 = vpack.c.b16 %v419, %v419
    %vm425 = vcmask 293888
    %v427 = vsel %vm425, %v402, 0
    %v430 = vsel %vm425, %v403, 0
    %v433 = vsel %vm425, %v404, 0
    %v436 = vsel %vm425, %v405, 0
    %v439 = vsel %vm425, %v406, 0
    %v442 = vsel %vm425, %v407, 0
    %v445 = vsel %vm425, %v408, 0
    %v448 = vsel %vm425, %v409, 0
    %v451 = vsel %vm285, %v422, 0
    %453 = vmatprep.subr.bf16.mxu0 0
    %454 = vmatpush1.bf16.msra.mxu0 0
    %455 = vmatprep.subr.bf16.mxu0 0
    %456 = vmatpush1.bf16.msra.mxu0 0
    %457 = vmatprep.subr.bf16.mxu0 0
    %458 = vmatpush1.bf16.msra.mxu0 0
    %459 = vmatprep.subr.bf16.mxu0 0
    %460 = vmatpush1.bf16.msra.mxu0 0
    %461 = vmatprep.subr.bf16.mxu0 0
    %462 = vmatpush1.bf16.msra.mxu0 0
    %463 = vmatprep.subr.bf16.mxu0 0
    %464 = vmatpush1.bf16.msra.mxu0 %v451
    %465 = vmatprep.subr.bf16.mxu0 0
    %466 = vmatpush1.bf16.msra.mxu0 %v421
    %467 = vmatprep.subr.bf16.mxu0 0
    %468 = vmatpush1.bf16.msra.mxu0 %v420
    %469 = vmatprep.subr.bf16.mxu0 0
    %470 = vmatpush2.bf16.msra.mxu0 0
    %471 = vmatprep.subr.bf16.mxu0 0
    %472 = vmatpush2.bf16.msra.mxu0 0
    %473 = vmatprep.subr.bf16.mxu0 0
    %474 = vmatpush2.bf16.msra.mxu0 0
    %475 = vmatprep.subr.bf16.mxu0 0
    %476 = vmatpush2.bf16.msra.mxu0 0
    %477 = vmatprep.subr.bf16.mxu0 0
    %478 = vmatpush2.bf16.msra.mxu0 0
    %479 = vmatprep.subr.bf16.mxu0 0
    %480 = vmatpush2.bf16.msra.mxu0 0
    %481 = vmatprep.subr.bf16.mxu0 0
    %482 = vmatpush2.bf16.msra.mxu0 0
    %483 = vmatprep.subr.bf16.mxu0 0
    %484 = vmatpush2.bf16.msra.mxu0 0
    %485 = vmatprep.mubr.bf16.mxu0 0
    %486 = vmatmul.mubr.bf16.gmra.mxu0 %v427
    %v487 = vpop.f32.mrf.mxu0
    %v488 = vadd.f32 %v324, %v487
    %v489 = vpop.f32.mrf.mxu0
    %v490 = vpop.f32.mrf.mxu0
    %v491 = vadd.f32 %v327, %v490
    %v492 = vpop.f32.mrf.mxu0
    %493 = vmatprep.mubr.bf16.mxu0 0
    %494 = vmatmul.mubr.bf16.gmra.mxu0 %v430
    %v495 = vpop.f32.mrf.mxu0
    %v496 = vadd.f32 %v332, %v495
    %v497 = vpop.f32.mrf.mxu0
    %v498 = vpop.f32.mrf.mxu0
    %v499 = vadd.f32 %v335, %v498
    %v500 = vpop.f32.mrf.mxu0
    %501 = vmatprep.mubr.bf16.mxu0 0
    %502 = vmatmul.mubr.bf16.gmra.mxu0 %v433
    %v503 = vpop.f32.mrf.mxu0
    %v504 = vadd.f32 %v340, %v503
    %v505 = vpop.f32.mrf.mxu0
    %v506 = vpop.f32.mrf.mxu0
    %v507 = vadd.f32 %v343, %v506
    %v508 = vpop.f32.mrf.mxu0
    %509 = vmatprep.mubr.bf16.mxu0 0
    %510 = vmatmul.mubr.bf16.gmra.mxu0 %v436
    %v511 = vpop.f32.mrf.mxu0
    %v512 = vadd.f32 %v348, %v511
    %v513 = vpop.f32.mrf.mxu0
    %v514 = vpop.f32.mrf.mxu0
    %v515 = vadd.f32 %v351, %v514
    %v516 = vpop.f32.mrf.mxu0
    %517 = vmatprep.mubr.bf16.mxu0 0
    %518 = vmatmul.mubr.bf16.gmra.mxu0 %v439
    %v519 = vpop.f32.mrf.mxu0
    %v520 = vadd.f32 %v356, %v519
    %v521 = vpop.f32.mrf.mxu0
    %v522 = vpop.f32.mrf.mxu0
    %v523 = vadd.f32 %v359, %v522
    %v524 = vpop.f32.mrf.mxu0
    %525 = vmatprep.mubr.bf16.mxu0 0
    %526 = vmatmul.mubr.bf16.gmra.mxu0 %v442
    %v527 = vpop.f32.mrf.mxu0
    %v528 = vadd.f32 %v364, %v527
    %v529 = vpop.f32.mrf.mxu0
    %v530 = vpop.f32.mrf.mxu0
    %v531 = vadd.f32 %v367, %v530
    %v532 = vpop.f32.mrf.mxu0
    %533 = vmatprep.mubr.bf16.mxu0 0
    %534 = vmatmul.mubr.bf16.gmra.mxu0 %v445
    %v535 = vpop.f32.mrf.mxu0
    %v536 = vadd.f32 %v372, %v535
    %v537 = vpop.f32.mrf.mxu0
    %v538 = vpop.f32.mrf.mxu0
    %v539 = vadd.f32 %v375, %v538
    %v540 = vpop.f32.mrf.mxu0
    %541 = vmatprep.mubr.bf16.mxu0 0
    %542 = vmatmul.mubr.bf16.gmra.mxu0 %v448
    %v543 = vpop.f32.mrf.mxu0
    %v544 = vadd.f32 %v380, %v543
    %v545 = vpop.f32.mrf.mxu0
    %v546 = vpop.f32.mrf.mxu0
    %v547 = vadd.f32 %v383, %v546
    %v548 = vpop.f32.mrf.mxu0
    %549 = vdwg.mxu0
    %v550 = vld [vmem:[%s3] sm:$0x1]
    %v552 = vlaneseq
    %v553 = vshrl.u32 %v552, 7
    %v554 = vsub.s32 0, %v553
    %v555 = vrot.slane %v550, %v554
    %v557 = vmul.f32 %v488, %v555
    %v558 = vmul.f32 %v491, %v555
    %v559 = vmul.f32 %v496, %v555
    %v560 = vmul.f32 %v499, %v555
    %v561 = vmul.f32 %v504, %v555
    %v562 = vmul.f32 %v507, %v555
    %v563 = vmul.f32 %v512, %v555
    %v564 = vmul.f32 %v515, %v555
    %v565 = vmul.f32 %v520, %v555
    %v566 = vmul.f32 %v523, %v555
    %v567 = vmul.f32 %v528, %v555
    %v568 = vmul.f32 %v531, %v555
    %v569 = vmul.f32 %v536, %v555
    %v570 = vmul.f32 %v539, %v555
    %v571 = vmul.f32 %v544, %v555
    %v572 = vmul.f32 %v547, %v555
    %v573 = vld [vmem:[%s4] sm:$0x1]
    %v575 = vlaneseq
    %v576 = vshrl.u32 %v575, 7
    %v577 = vsub.s32 0, %v576
    %v578 = vrot.slane %v573, %v577
    %v580 = vadd.f32 %v557, %v578
    %v581 = vadd.f32 %v558, %v578
    %v582 = vadd.f32 %v559, %v578
    %v583 = vadd.f32 %v560, %v578
    %v584 = vadd.f32 %v561, %v578
    %v585 = vadd.f32 %v562, %v578
    %v586 = vadd.f32 %v563, %v578
    %v587 = vadd.f32 %v564, %v578
    %v588 = vadd.f32 %v565, %v578
    %v589 = vadd.f32 %v566, %v578
    %v590 = vadd.f32 %v567, %v578
    %v591 = vadd.f32 %v568, %v578
    %v592 = vadd.f32 %v569, %v578
    %v593 = vadd.f32 %v570, %v578
    %v594 = vadd.f32 %v571, %v578
    %v595 = vadd.f32 %v572, %v578
    %v596 = vmax.f32 %v580, 0.0
    %v597 = vmax.f32 %v581, 0.0
    %v598 = vmax.f32 %v582, 0.0
    %v599 = vmax.f32 %v583, 0.0
    %v600 = vmax.f32 %v584, 0.0
    %v601 = vmax.f32 %v585, 0.0
    %v602 = vmax.f32 %v586, 0.0
    %v603 = vmax.f32 %v587, 0.0
    %v604 = vmax.f32 %v588, 0.0
    %v605 = vmax.f32 %v589, 0.0
    %v606 = vmax.f32 %v590, 0.0
    %v607 = vmax.f32 %v591, 0.0
    %v608 = vmax.f32 %v592, 0.0
    %v609 = vmax.f32 %v593, 0.0
    %v610 = vmax.f32 %v594, 0.0
    %v611 = vmax.f32 %v595, 0.0
    %612 = vst [vmem:[#allocation2] sm:$0xff] %v596
    %613 = vst [vmem:[#allocation2 + $0x8] sm:$0xff] %v597
    %614 = vst [vmem:[#allocation2 + $0x10] sm:$0xff] %v598
    %615 = vst [vmem:[#allocation2 + $0x18] sm:$0xff] %v599
    %616 = vst [vmem:[#allocation2 + $0x20] sm:$0xff] %v600
    %617 = vst [vmem:[#allocation2 + $0x28] sm:$0xff] %v601
    %618 = vst [vmem:[#allocation2 + $0x30] sm:$0xff] %v602
    %619 = vst [vmem:[#allocation2 + $0x38] sm:$0xff] %v603
    %620 = vst [vmem:[#allocation2 + $0x40] sm:$0xff] %v604
    %621 = vst [vmem:[#allocation2 + $0x48] sm:$0xff] %v605
    %622 = vst [vmem:[#allocation2 + $0x50] sm:$0xff] %v606
    %623 = vst [vmem:[#allocation2 + $0x58] sm:$0xff] %v607
    %624 = vst [vmem:[#allocation2 + $0x60] sm:$0xff] %v608
    %625 = vst [vmem:[#allocation2 + $0x68] sm:$0xff] %v609
    %626 = vst [vmem:[#allocation2 + $0x70] sm:$0xff] %v610
    %627 = vst [vmem:[#allocation2 + $0x78] sm:$0xff] %v611
    // Predicated region
    $region22: #{downsampler_block.1} parent=1 // pred_check
      _
    $region23: #{downsampler_block.1} parent=1 // pred_check_branch
      %629 = sbr.rel (0) target = $region25
    $region24: #{downsampler_block.1} parent=1 // pred_region
      %s631 = ssub.s32 2048, 2048
      %632 = vsyncadd [#allocation3], %s631
      %s633 = sshll.u32 [#allocation2], 4
      %s634 = int_to_ptr.vmem [resolvable:$true] %s633
      %639 = dma.vmem_to_hbm [thread:$0]  %s634, 2048, %s5, [#allocation3], 128, 128, 8
    $region25: #{downsampler_block.1} parent=1 // pred_fallthru
      _
    // Predicated region
    $region26: #{downsampler_block.1} parent=1 // pred_check
      _
    $region27: #{downsampler_block.1} parent=1 // pred_check_branch
      %641 = sbr.rel (0) target = $region29
    $region28: #{downsampler_block.1} parent=1 // pred_region
      %642 = dma.done [#allocation3], 2048
    $region29: #{downsampler_block.1} parent=1 // pred_fallthru
      _
    %643 = vsyncpa [#allocation3], 1

</llo_original>
